<compile_context>
chip_gen: v6e
topology: v6e:2x2x1
jax: 0.10.0
libtpu: 0.0.40
codegen_flags: <defaults>
</compile_context>

<pallas_src>
import functools

import jax
import jax.numpy as jnp
from jax.experimental import pallas as pl
from jax.experimental.pallas import tpu as pltpu

LANE = 128           # TPU lane width; hidden dims zero-padded to this
WB_ROWS = 144        # 128 weight rows + bias row (index 128) + pad to bf16 sublane tile
FC1_ROWS = 16        # fc1 block: rows 0:in_features weights, row 8 = bias
FC1_BIAS_ROW = 8
OUT_PAD = 8          # narrow lane-padded output width (>= out_features)


def _round_up(n, m):
    return ((n + m - 1) // m) * m


def _cdiv(a, b):
    return -(-a // b)


def mlp_kernel(x_ref, w1_ref, wmid_ref, o_ref):
    """Fused 4-layer MLP for one (tile_b, OUT_PAD) output tile.

    x_ref   : (tile_b, in_features) f32   activation tile for this grid step
    w1_ref  : (FC1_ROWS, LANE)      f32   fc1 weights (rows 0:K) + bias (row 8)
    wmid_ref: (3, WB_ROWS, LANE)    bf16  fc2/fc3/out weights + bias (row 128)
    o_ref   : (tile_b, OUT_PAD)     f32   narrow (lane-padded) output tile
    """
    x = x_ref[...]                              # (tile_b, in_features), f32
    in_features = x.shape[1]                    # static (== 4)

    # ---- fc1: K = in_features (4). A 4-deep contraction wastes the MXU, so
    # compute it as unrolled VPU FMAs with a balanced reduction tree
    # (dependent-add depth 3 instead of 5; broadcasts can overlap).
    w1 = w1_ref[0:FC1_BIAS_ROW, :]              # (8, LANE); rows 0:K used
    b1 = w1_ref[FC1_BIAS_ROW:FC1_BIAS_ROW + 1, :]
    terms = [x[:, k:k + 1] * w1[k:k + 1, :] for k in range(in_features)]
    while len(terms) > 1:
        nxt = [terms[i] + terms[i + 1] for i in range(0, len(terms) - 1, 2)]
        if len(terms) % 2:
            nxt.append(terms[-1])
        terms = nxt
    h = jnp.maximum(terms[0] + b1, 0.0)         # (tile_b, LANE), f32

    # ---- fc2 / fc3: bf16 operands on the MXU, f32 accumulation, ReLU in f32.
    for l in (0, 1):
        w = wmid_ref[l, 0:LANE, :]              # (LANE, LANE) bf16
        b = wmid_ref[l, LANE:LANE + 1, :].astype(jnp.float32)
        h = jnp.dot(h.astype(jnp.bfloat16), w,
                    preferred_element_type=jnp.float32) + b
        h = jnp.maximum(h, 0.0)

    # ---- out layer: full 128-wide MXU matmul, then keep only the first
    # OUT_PAD lanes so only a narrow slab goes back to HBM.
    w = wmid_ref[2, 0:LANE, :]
    b = wmid_ref[2, LANE:LANE + 1, :].astype(jnp.float32)
    y = jnp.dot(h.astype(jnp.bfloat16), w, preferred_element_type=jnp.float32) + b
    o_ref[...] = y[:, 0:OUT_PAD]


def _choose_tiling(batch, desired_tile=1024):
    """Pick (tile_b, b_pad): tile_b multiple of 8, <= desired_tile, >= 2 grid
    steps whenever the batch permits (v7x dual-TC), and at most ~8 rows of
    padding waste per grid step."""
    b8 = _round_up(batch, 8)
    min_steps = 2 if b8 >= 16 else 1
    steps = max(min_steps, _cdiv(b8, desired_tile))
    tile_b = _round_up(_cdiv(b8, steps), 8)
    grid = _cdiv(b8, tile_b)
    return tile_b, grid * tile_b


def mlp_forward(x, w1_packed, wmid_packed, out_features, *, desired_tile=1024):
    """y = MLP(x) with the fused Pallas kernel. x: (B, in_features) f32."""
    batch, in_features = x.shape
    assert in_features <= FC1_BIAS_ROW, "fc1 FMA path assumes in_features <= 8"

    tile_b, b_pad = _choose_tiling(batch, desired_tile)
    if b_pad != batch:
        x = jnp.pad(x, ((0, b_pad - batch), (0, 0)))

    out = pl.pallas_call(
        mlp_kernel,
        out_shape=jax.ShapeDtypeStruct((b_pad, OUT_PAD), jnp.float32),
        grid=(b_pad // tile_b,),
        in_specs=[
            # Activations: streamed tile-by-tile along the batch axis.
            pl.BlockSpec((tile_b, in_features), lambda i: (i, 0)),
            # Packed weights+biases: same block every step -> VMEM-resident.
            pl.BlockSpec((FC1_ROWS, LANE), lambda i: (0, 0)),
            pl.BlockSpec((3, WB_ROWS, LANE), lambda i: (0, 0, 0)),
        ],
        out_specs=pl.BlockSpec((tile_b, OUT_PAD), lambda i: (i, 0)),
        compiler_params=pltpu.CompilerParams(
            dimension_semantics=("parallel",)),  # lets v7x shard batch on 2 TCs
    )(x, w1_packed, wmid_packed)

    if b_pad != batch:
        out = out[:batch]
    if out_features != OUT_PAD:
        out = out[:, :out_features]
    return out


def init_linear(key, fan_in, fan_out):
    # PyTorch nn.Linear default init: U(-1/sqrt(fan_in), 1/sqrt(fan_in)).
    kw, kb = jax.random.split(key)
    bound = 1.0 / (fan_in ** 0.5)
    w = jax.random.uniform(kw, (fan_in, fan_out), jnp.float32, -bound, bound)
    b = jax.random.uniform(kb, (fan_out,), jnp.float32, -bound, bound)
    return w, b


def make_params(key, in_features=4, h1=10, h2=10, h3=10, output=2):
    dims = [in_features, h1, h2, h3, output]
    keys = jax.random.split(key, len(dims) - 1)
    return tuple(init_linear(k, dims[i], dims[i + 1]) for i, k in enumerate(keys))


def pack_params(params):
    """Pack layer weights for the kernel.

    NOTE: expects each weight in (fan_in, fan_out) layout; a real PyTorch
    nn.Linear stores weight as (out_features, in_features), so transpose
    (w.T) torch weights before packing.
    """
    w1, b1 = params[0]
    w1p = jnp.zeros((FC1_ROWS, LANE), jnp.float32)
    w1p = w1p.at[:w1.shape[0], :w1.shape[1]].set(w1)
    w1p = w1p.at[FC1_BIAS_ROW, :b1.shape[0]].set(b1)

    wmid = jnp.zeros((3, WB_ROWS, LANE), jnp.float32)
    for l, (w, b) in enumerate(params[1:]):
        wmid = wmid.at[l, :w.shape[0], :w.shape[1]].set(w)
        wmid = wmid.at[l, LANE, :b.shape[0]].set(b)
    return w1p, wmid.astype(jnp.bfloat16)


def mlp_reference(x, params):
    h = x
    for i, (w, b) in enumerate(params):
        h = h @ w + b
        if i < len(params) - 1:
            h = jnp.maximum(h, 0.0)
    return h


if __name__ == "__main__":
    key = jax.random.PRNGKey(0)
    k_param, k_x = jax.random.split(key)

    params = make_params(k_param, in_features=4, h1=10, h2=10, h3=10, output=2)
    w1_packed, wmid_packed = pack_params(params)
    out_features = params[-1][0].shape[1]

    x = jax.random.normal(k_x, (8, 4), dtype=jnp.float32)  # batch=8, in=4

    fwd = jax.jit(functools.partial(mlp_forward, out_features=out_features))
    out = jax.block_until_ready(fwd(x, w1_packed, wmid_packed))

    ref = mlp_reference(x, params)
    assert out.shape == (8, out_features), out.shape
    # fc2/fc3/out run with bf16 MXU operands (f32 accumulation), so compare
    # against the pure-f32 reference with a bf16-appropriate tolerance.
    max_err = float(jnp.max(jnp.abs(out - ref)))
    assert jnp.allclose(out, ref, atol=5e-2, rtol=5e-2), f"max_err={max_err}"

    print("KERNEL_OK")
</pallas_src>

<mosaic_0001>
module attributes {stable_mosaic.version = 11 : i64} {
  func.func @mlp_kernel(%arg0: i32, %arg1: memref<8x4xf32, #tpu.memory_space<vmem>>, %arg2: memref<16x128xf32, #tpu.memory_space<vmem>>, %arg3: memref<3x144x128xbf16, #tpu.memory_space<vmem>>, %arg4: memref<8x8xf32, #tpu.memory_space<vmem>>) attributes {dimension_semantics = [#tpu.dimension_semantics<parallel>], iteration_bounds = array<i64: 1>, scalar_prefetch = 0 : i64, scratch_operands = 0 : i64, tpu.core_type = #tpu.core_type<tc>, window_params = [{transform_indices = @transform_0, window_bounds = array<i64: 8, 4>}, {pipeline_mode = #tpu.pipeline_mode<synchronous>, transform_indices = @transform_1, window_bounds = array<i64: 16, 128>}, {pipeline_mode = #tpu.pipeline_mode<synchronous>, transform_indices = @transform_2, window_bounds = array<i64: 3, 144, 128>}, {transform_indices = @transform_3, window_bounds = array<i64: 8, 8>}]} {
    %c0 = arith.constant 0 : index
    %c0_0 = arith.constant 0 : index
    %0 = vector.load %arg1[%c0, %c0_0] : memref<8x4xf32, #tpu.memory_space<vmem>>, vector<8x4xf32>
    %c0_1 = arith.constant 0 : index
    %c0_2 = arith.constant 0 : index
    %1 = vector.load %arg2[%c0_1, %c0_2] : memref<16x128xf32, #tpu.memory_space<vmem>>, vector<8x128xf32>
    %c8 = arith.constant 8 : index
    %c0_3 = arith.constant 0 : index
    %2 = vector.load %arg2[%c8, %c0_3] : memref<16x128xf32, #tpu.memory_space<vmem>>, vector<1x128xf32>
    %3 = vector.extract_strided_slice %0 {offsets = [0, 0], sizes = [8, 1], strides = [1, 1]} : vector<8x4xf32> to vector<8x1xf32>
    %4 = vector.extract_strided_slice %1 {offsets = [0, 0], sizes = [1, 128], strides = [1, 1]} : vector<8x128xf32> to vector<1x128xf32>
    %5 = vector.broadcast %3 : vector<8x1xf32> to vector<8x128xf32>
    %6 = vector.broadcast %4 : vector<1x128xf32> to vector<8x128xf32>
    %7 = arith.mulf %5, %6 : vector<8x128xf32>
    %8 = vector.extract_strided_slice %0 {offsets = [0, 1], sizes = [8, 1], strides = [1, 1]} : vector<8x4xf32> to vector<8x1xf32>
    %9 = vector.extract_strided_slice %1 {offsets = [1, 0], sizes = [1, 128], strides = [1, 1]} : vector<8x128xf32> to vector<1x128xf32>
    %10 = vector.broadcast %8 : vector<8x1xf32> to vector<8x128xf32>
    %11 = vector.broadcast %9 : vector<1x128xf32> to vector<8x128xf32>
    %12 = arith.mulf %10, %11 : vector<8x128xf32>
    %13 = vector.extract_strided_slice %0 {offsets = [0, 2], sizes = [8, 1], strides = [1, 1]} : vector<8x4xf32> to vector<8x1xf32>
    %14 = vector.extract_strided_slice %1 {offsets = [2, 0], sizes = [1, 128], strides = [1, 1]} : vector<8x128xf32> to vector<1x128xf32>
    %15 = vector.broadcast %13 : vector<8x1xf32> to vector<8x128xf32>
    %16 = vector.broadcast %14 : vector<1x128xf32> to vector<8x128xf32>
    %17 = arith.mulf %15, %16 : vector<8x128xf32>
    %18 = vector.extract_strided_slice %0 {offsets = [0, 3], sizes = [8, 1], strides = [1, 1]} : vector<8x4xf32> to vector<8x1xf32>
    %19 = vector.extract_strided_slice %1 {offsets = [3, 0], sizes = [1, 128], strides = [1, 1]} : vector<8x128xf32> to vector<1x128xf32>
    %20 = vector.broadcast %18 : vector<8x1xf32> to vector<8x128xf32>
    %21 = vector.broadcast %19 : vector<1x128xf32> to vector<8x128xf32>
    %22 = arith.mulf %20, %21 : vector<8x128xf32>
    %23 = arith.addf %7, %12 : vector<8x128xf32>
    %24 = arith.addf %17, %22 : vector<8x128xf32>
    %25 = arith.addf %23, %24 : vector<8x128xf32>
    %26 = vector.broadcast %2 : vector<1x128xf32> to vector<8x128xf32>
    %27 = arith.addf %25, %26 : vector<8x128xf32>
    %cst = arith.constant 0.000000e+00 : f32
    %28 = vector.broadcast %cst : f32 to vector<8x128xf32>
    %29 = arith.maximumf %27, %28 : vector<8x128xf32>
    %c0_4 = arith.constant 0 : index
    %c0_5 = arith.constant 0 : index
    %c0_6 = arith.constant 0 : index
    %30 = vector.load %arg3[%c0_4, %c0_5, %c0_6] : memref<3x144x128xbf16, #tpu.memory_space<vmem>>, vector<1x128x128xbf16>
    %31 = vector.shape_cast %30 : vector<1x128x128xbf16> to vector<128x128xbf16>
    %c0_7 = arith.constant 0 : index
    %c128 = arith.constant 128 : index
    %c0_8 = arith.constant 0 : index
    %32 = vector.load %arg3[%c0_7, %c128, %c0_8] : memref<3x144x128xbf16, #tpu.memory_space<vmem>>, vector<1x1x128xbf16>
    %33 = vector.shape_cast %32 : vector<1x1x128xbf16> to vector<1x128xbf16>
    %34 = arith.extf %33 : vector<1x128xbf16> to vector<1x128xf32>
    %35 = arith.truncf %29 : vector<8x128xf32> to vector<8x128xbf16>
    %cst_9 = arith.constant dense<0.000000e+00> : vector<8x128xf32>
    %36 = tpu.matmul %35, %31, %cst_9 {dimension_numbers = #tpu.dot_dimension_numbers<[1], [0], [0], [1], [0, 0, 1, 1], [], []>} : vector<8x128xbf16>, vector<128x128xbf16>, vector<8x128xf32> -> vector<8x128xf32>
    %37 = vector.broadcast %34 : vector<1x128xf32> to vector<8x128xf32>
    %38 = arith.addf %36, %37 : vector<8x128xf32>
    %cst_10 = arith.constant 0.000000e+00 : f32
    %39 = vector.broadcast %cst_10 : f32 to vector<8x128xf32>
    %40 = arith.maximumf %38, %39 : vector<8x128xf32>
    %c1 = arith.constant 1 : index
    %c0_11 = arith.constant 0 : index
    %c0_12 = arith.constant 0 : index
    %41 = vector.load %arg3[%c1, %c0_11, %c0_12] : memref<3x144x128xbf16, #tpu.memory_space<vmem>>, vector<1x128x128xbf16>
    %42 = vector.shape_cast %41 : vector<1x128x128xbf16> to vector<128x128xbf16>
    %c1_13 = arith.constant 1 : index
    %c128_14 = arith.constant 128 : index
    %c0_15 = arith.constant 0 : index
    %43 = vector.load %arg3[%c1_13, %c128_14, %c0_15] : memref<3x144x128xbf16, #tpu.memory_space<vmem>>, vector<1x1x128xbf16>
    %44 = vector.shape_cast %43 : vector<1x1x128xbf16> to vector<1x128xbf16>
    %45 = arith.extf %44 : vector<1x128xbf16> to vector<1x128xf32>
    %46 = arith.truncf %40 : vector<8x128xf32> to vector<8x128xbf16>
    %cst_16 = arith.constant dense<0.000000e+00> : vector<8x128xf32>
    %47 = tpu.matmul %46, %42, %cst_16 {dimension_numbers = #tpu.dot_dimension_numbers<[1], [0], [0], [1], [0, 0, 1, 1], [], []>} : vector<8x128xbf16>, vector<128x128xbf16>, vector<8x128xf32> -> vector<8x128xf32>
    %48 = vector.broadcast %45 : vector<1x128xf32> to vector<8x128xf32>
    %49 = arith.addf %47, %48 : vector<8x128xf32>
    %cst_17 = arith.constant 0.000000e+00 : f32
    %50 = vector.broadcast %cst_17 : f32 to vector<8x128xf32>
    %51 = arith.maximumf %49, %50 : vector<8x128xf32>
    %c2 = arith.constant 2 : index
    %c0_18 = arith.constant 0 : index
    %c0_19 = arith.constant 0 : index
    %52 = vector.load %arg3[%c2, %c0_18, %c0_19] : memref<3x144x128xbf16, #tpu.memory_space<vmem>>, vector<1x128x128xbf16>
    %53 = vector.shape_cast %52 : vector<1x128x128xbf16> to vector<128x128xbf16>
    %c2_20 = arith.constant 2 : index
    %c128_21 = arith.constant 128 : index
    %c0_22 = arith.constant 0 : index
    %54 = vector.load %arg3[%c2_20, %c128_21, %c0_22] : memref<3x144x128xbf16, #tpu.memory_space<vmem>>, vector<1x1x128xbf16>
    %55 = vector.shape_cast %54 : vector<1x1x128xbf16> to vector<1x128xbf16>
    %56 = arith.extf %55 : vector<1x128xbf16> to vector<1x128xf32>
    %57 = arith.truncf %51 : vector<8x128xf32> to vector<8x128xbf16>
    %cst_23 = arith.constant dense<0.000000e+00> : vector<8x128xf32>
    %58 = tpu.matmul %57, %53, %cst_23 {dimension_numbers = #tpu.dot_dimension_numbers<[1], [0], [0], [1], [0, 0, 1, 1], [], []>} : vector<8x128xbf16>, vector<128x128xbf16>, vector<8x128xf32> -> vector<8x128xf32>
    %59 = vector.broadcast %56 : vector<1x128xf32> to vector<8x128xf32>
    %60 = arith.addf %58, %59 : vector<8x128xf32>
    %61 = vector.extract_strided_slice %60 {offsets = [0, 0], sizes = [8, 8], strides = [1, 1]} : vector<8x128xf32> to vector<8x8xf32>
    %c0_24 = arith.constant 0 : index
    %c0_25 = arith.constant 0 : index
    %62 = vector.load %arg4[%c0_24, %c0_25] : memref<8x8xf32, #tpu.memory_space<vmem>>, vector<8x8xf32>
    tpu.vector_store %arg4[%c0_24, %c0_25], %61 {strides = array<i32>} : memref<8x8xf32, #tpu.memory_space<vmem>>, vector<8x8xf32>,
    return
  }
  func.func @transform_0(%arg0: i32) -> (i32, i32) {
    %c0_i32 = arith.constant 0 : i32
    %c0_i32_0 = arith.constant 0 : i32
    return %arg0, %c0_i32 : i32, i32
  }
  func.func @transform_1(%arg0: i32) -> (i32, i32) {
    %c0_i32 = arith.constant 0 : i32
    %c0_i32_0 = arith.constant 0 : i32
    %c0_i32_1 = arith.constant 0 : i32
    return %c0_i32, %c0_i32_0 : i32, i32
  }
  func.func @transform_2(%arg0: i32) -> (i32, i32, i32) {
    %c0_i32 = arith.constant 0 : i32
    %c0_i32_0 = arith.constant 0 : i32
    %c0_i32_1 = arith.constant 0 : i32
    %c0_i32_2 = arith.constant 0 : i32
    return %c0_i32, %c0_i32_0, %c0_i32_1 : i32, i32, i32
  }
  func.func @transform_3(%arg0: i32) -> (i32, i32) {
    %c0_i32 = arith.constant 0 : i32
    %c0_i32_0 = arith.constant 0 : i32
    return %arg0, %c0_i32 : i32, i32
  }
}

</mosaic_0001>

<llo_original>
// kernel: mlp_forward.1
$region0: #{mlp_forward.1}
  #allocation0 [shape = 'u32[]', space=smem, size = 0x4, offset = 0x4, fixed_abs, tag = 'smem constant byte address 0x4 - core index']
  #allocation1 [shape = 'u32[144,128]{1,0:T(1,128)}', space=vmem, size = 0x12000, scoped, tag = 'internal scratch']
  %s0 = inlined_call_operand.vmem [shape: f32[8,4], index: 0, kind: input, shape index: {}]
  %s1 = inlined_call_operand.hbm [shape: f32[16,128], index: 1, kind: input, shape index: {}]
  %s2 = inlined_call_operand.hbm [shape: bf16[3,144,128], index: 2, kind: input, shape index: {}]
  %s3 = inlined_call_operand.vmem [shape: f32[8,8], index: 3, kind: output, shape index: {}]
  %s4 = sld [smem:[#allocation0]]
  $region30: #{mlp_forward.1} parent=0
    _
  %s6 = ssub.s32 1, %s4
  %s7 = scalar_select 0, %s6, %s4
  $region1: #{mlp_forward.1} parent=0
    #allocation2 [shape = 'u8[8192]{0}', space=vmem, size = 0x2000, scoped, tag = 'input window, operand 1, single buffered']
    #allocation3 [shape = 's32[1]{0}', space=sflag, size = 0x4, scoped, tag = 'scoped memory for mlp_forward.1']
    #allocation4 [shape = 'u8[110592]{0}', space=vmem, size = 0x1b000, scoped, tag = 'input window, operand 2, single buffered']
    #allocation5 [shape = 's32[1]{0}', space=sflag, size = 0x4, scoped, tag = 'scoped memory for mlp_forward.1']
    %8 = vsyncpa [#allocation3], 0
    %9 = vsyncpa [#allocation5], 0
    // Predicated region
    $region2: #{mlp_forward.1} parent=1 // pred_check
      _
    $region3: #{mlp_forward.1} parent=1 // pred_check_branch
      %11 = sbr.rel (0) target = $region5
    $region4: #{mlp_forward.1} parent=1 // pred_region
      _
    $region5: #{mlp_forward.1} parent=1 // pred_fallthru
      _
    // Predicated region
    $region6: #{mlp_forward.1} parent=1 // pred_check
      _
    $region7: #{mlp_forward.1} parent=1 // pred_check_branch
      %13 = sbr.rel (0) target = $region9
    $region8: #{mlp_forward.1} parent=1 // pred_region
      %s15 = ssub.s32 256, 256
      %16 = vsyncadd [#allocation3], %s15
      %s17 = sshll.u32 [#allocation2], 4
      %s18 = int_to_ptr.vmem [resolvable:$true] %s17
      %23 = dma.hbm_to_vmem [thread:$0]  %s1, 256, %s18, [#allocation3], 128, 128, 8
    $region9: #{mlp_forward.1} parent=1 // pred_fallthru
      _
    // Predicated region
    $region10: #{mlp_forward.1} parent=1 // pred_check
      _
    $region11: #{mlp_forward.1} parent=1 // pred_check_branch
      %25 = sbr.rel (0) target = $region13
    $region12: #{mlp_forward.1} parent=1 // pred_region
      %s27 = ssub.s32 3456, 3456
      %28 = vsyncadd [#allocation5], %s27
      %s29 = sshll.u32 [#allocation4], 4
      %s30 = int_to_ptr.vmem [resolvable:$true] %s29
      %35 = dma.hbm_to_vmem [thread:$0]  %s2, 3456, %s30, [#allocation5], 64, 64, 4
    $region13: #{mlp_forward.1} parent=1 // pred_fallthru
      _
    // Predicated region
    $region14: #{mlp_forward.1} parent=1 // pred_check
      _
    $region15: #{mlp_forward.1} parent=1 // pred_check_branch
      %37 = sbr.rel (0) target = $region17
    $region16: #{mlp_forward.1} parent=1 // pred_region
      %38 = dma.done [#allocation3], 256
    $region17: #{mlp_forward.1} parent=1 // pred_fallthru
      _
    // Predicated region
    $region18: #{mlp_forward.1} parent=1 // pred_check
      _
    $region19: #{mlp_forward.1} parent=1 // pred_check_branch
      %40 = sbr.rel (0) target = $region21
    $region20: #{mlp_forward.1} parent=1 // pred_region
      %41 = dma.done [#allocation5], 3456
    $region21: #{mlp_forward.1} parent=1 // pred_fallthru
      _
    %v43 = vld [vmem:[%s0] sm:$0xff]
    %v44 = vld [vmem:[#allocation2] sm:$0xff]
    %v45 = vld [vmem:[#allocation2 + $0x8] sm:$0x1]
    %47 = vset.pattern.permute.xlu0 0
    %48 = vperm.xlu0 %47, %v43
    %v49 = vpop.permute.xlu0 %48
    %v51 = vlaneseq
    %v52 = vshrl.u32 %v51, 7
    %v53 = vsub.s32 0, %v52
    %v54 = vrot.slane %v44, %v53
    %v55 = vmul.f32 %v49, %v54
    %56 = vset.pattern.permute.xlu0 1
    %57 = vperm.xlu0 %56, %v43
    %v58 = vpop.permute.xlu0 %57
    %v60 = vlaneseq
    %v61 = vshrl.u32 %v60, 7
    %v62 = vsub.s32 1, %v61
    %v63 = vrot.slane %v44, %v62
    %v64 = vmul.f32 %v58, %v63
    %65 = vset.pattern.permute.xlu0 2
    %66 = vperm.xlu0 %65, %v43
    %v67 = vpop.permute.xlu0 %66
    %v69 = vlaneseq
    %v70 = vshrl.u32 %v69, 7
    %v71 = vsub.s32 2, %v70
    %v72 = vrot.slane %v44, %v71
    %v73 = vmul.f32 %v67, %v72
    %74 = vset.pattern.permute.xlu0 3
    %75 = vperm.xlu0 %74, %v43
    %v76 = vpop.permute.xlu0 %75
    %v78 = vlaneseq
    %v79 = vshrl.u32 %v78, 7
    %v80 = vsub.s32 3, %v79
    %v81 = vrot.slane %v44, %v80
    %v82 = vmul.f32 %v76, %v81
    %v83 = vadd.f32 %v55, %v64
    %v84 = vadd.f32 %v73, %v82
    %v85 = vadd.f32 %v83, %v84
    %v86 = vlaneseq
    %v87 = vshrl.u32 %v86, 7
    %v88 = vsub.s32 0, %v87
    %v89 = vrot.slane %v45, %v88
    %v90 = vadd.f32 %v85, %v89
    %v91 = vmax.f32 %v90, 0.0
    %v92 = vld [vmem:[#allocation4] sm:$0xf]
    %v93 = vld [vmem:[#allocation4 + $0x4] sm:$0xf]
    %v94 = vld [vmem:[#allocation4 + $0x8] sm:$0xf]
    %v95 = vld [vmem:[#allocation4 + $0xc] sm:$0xf]
    %v96 = vld [vmem:[#allocation4 + $0x10] sm:$0xf]
    %v97 = vld [vmem:[#allocation4 + $0x14] sm:$0xf]
    %v98 = vld [vmem:[#allocation4 + $0x18] sm:$0xf]
    %v99 = vld [vmem:[#allocation4 + $0x1c] sm:$0xf]
    %v100 = vld [vmem:[#allocation4 + $0x20] sm:$0xf]
    %v101 = vld [vmem:[#allocation4 + $0x24] sm:$0xf]
    %v102 = vld [vmem:[#allocation4 + $0x28] sm:$0xf]
    %v103 = vld [vmem:[#allocation4 + $0x2c] sm:$0xf]
    %v104 = vld [vmem:[#allocation4 + $0x30] sm:$0xf]
    %v105 = vld [vmem:[#allocation4 + $0x34] sm:$0xf]
    %v106 = vld [vmem:[#allocation4 + $0x38] sm:$0xf]
    %v107 = vld [vmem:[#allocation4 + $0x3c] sm:$0xf]
    %v108 = vld [vmem:[#allocation4 + $0x40] sm:$0x1]
    %v109 = vunpack.c.l.bf16 %v108
    %v110 = vpack.c.bf16 %v91, %v91
    %v111 = vlaneseq
    %v112 = vshrl.u32 %v111, 7
    %v113 = vsub.s32 0, %v112
    %v114 = vrot.slane %v109, %v113
    %v131 = vunpack.c.l.b16 %v92
    %v132 = vunpack.c.l.b16 %v93
    %v133 = vunpack.c.l.b16 %v94
    %v134 = vunpack.c.l.b16 %v95
    %v135 = vunpack.c.l.b16 %v96
    %v136 = vunpack.c.l.b16 %v97
    %v137 = vunpack.c.l.b16 %v98
    %v138 = vunpack.c.l.b16 %v99
    %v139 = vunpack.c.l.b16 %v100
    %v140 = vunpack.c.l.b16 %v101
    %v141 = vunpack.c.l.b16 %v102
    %v142 = vunpack.c.l.b16 %v103
    %v143 = vunpack.c.l.b16 %v104
    %v144 = vunpack.c.l.b16 %v105
    %v145 = vunpack.c.l.b16 %v106
    %v146 = vunpack.c.l.b16 %v107
    %v147 = vpack.c.b16 %v132, %v131
    %v148 = vpack.c.b16 %v134, %v133
    %v149 = vpack.c.b16 %v136, %v135
    %v150 = vpack.c.b16 %v138, %v137
    %v151 = vpack.c.b16 %v140, %v139
    %v152 = vpack.c.b16 %v142, %v141
    %v153 = vpack.c.b16 %v144, %v143
    %v154 = vpack.c.b16 %v146, %v145
    %163 = vmatprep.subr.bf16.mxu0 0
    %164 = vmatpush1.bf16.msra.mxu0 %v154
    %165 = vmatprep.subr.bf16.mxu0 0
    %166 = vmatpush1.bf16.msra.mxu0 %v153
    %167 = vmatprep.subr.bf16.mxu0 0
    %168 = vmatpush1.bf16.msra.mxu0 %v152
    %169 = vmatprep.subr.bf16.mxu0 0
    %170 = vmatpush1.bf16.msra.mxu0 %v151
    %171 = vmatprep.subr.bf16.mxu0 0
    %172 = vmatpush1.bf16.msra.mxu0 %v150
    %173 = vmatprep.subr.bf16.mxu0 0
    %174 = vmatpush1.bf16.msra.mxu0 %v149
    %175 = vmatprep.subr.bf16.mxu0 0
    %176 = vmatpush1.bf16.msra.mxu0 %v148
    %177 = vmatprep.subr.bf16.mxu0 0
    %178 = vmatpush1.bf16.msra.mxu0 %v147
    %179 = vmatprep.subr.bf16.mxu0 0
    %180 = vmatpush2.bf16.msra.mxu0 0
    %181 = vmatprep.subr.bf16.mxu0 0
    %182 = vmatpush2.bf16.msra.mxu0 0
    %183 = vmatprep.subr.bf16.mxu0 0
    %184 = vmatpush2.bf16.msra.mxu0 0
    %185 = vmatprep.subr.bf16.mxu0 0
    %186 = vmatpush2.bf16.msra.mxu0 0
    %187 = vmatprep.subr.bf16.mxu0 0
    %188 = vmatpush2.bf16.msra.mxu0 0
    %189 = vmatprep.subr.bf16.mxu0 0
    %190 = vmatpush2.bf16.msra.mxu0 0
    %191 = vmatprep.subr.bf16.mxu0 0
    %192 = vmatpush2.bf16.msra.mxu0 0
    %193 = vmatprep.subr.bf16.mxu0 0
    %194 = vmatpush2.bf16.msra.mxu0 0
    %195 = vmatprep.mubr.bf16.mxu0 0
    %196 = vmatmul.mubr.bf16.gmra.mxu0 %v110
    %v197 = vpop.f32.mrf.mxu0
    %v198 = vadd.f32 %v114, %v197
    %v199 = vpop.f32.mrf.mxu0
    %v200 = vpop.f32.mrf.mxu0
    %v201 = vpop.f32.mrf.mxu0
    %202 = vdwg.mxu0
    %v203 = vmax.f32 %v198, 0.0
    %s204 = scalar_lea.vmem [#allocation4], 72
    %v205 = vld [vmem:[%s204] sm:$0xf]
    %v206 = vld [vmem:[%s204 + $0x4] sm:$0xf]
    %v207 = vld [vmem:[%s204 + $0x8] sm:$0xf]
    %v208 = vld [vmem:[%s204 + $0xc] sm:$0xf]
    %v209 = vld [vmem:[%s204 + $0x10] sm:$0xf]
    %v210 = vld [vmem:[%s204 + $0x14] sm:$0xf]
    %v211 = vld [vmem:[%s204 + $0x18] sm:$0xf]
    %v212 = vld [vmem:[%s204 + $0x1c] sm:$0xf]
    %v213 = vld [vmem:[%s204 + $0x20] sm:$0xf]
    %v214 = vld [vmem:[%s204 + $0x24] sm:$0xf]
    %v215 = vld [vmem:[%s204 + $0x28] sm:$0xf]
    %v216 = vld [vmem:[%s204 + $0x2c] sm:$0xf]
    %v217 = vld [vmem:[%s204 + $0x30] sm:$0xf]
    %v218 = vld [vmem:[%s204 + $0x34] sm:$0xf]
    %v219 = vld [vmem:[%s204 + $0x38] sm:$0xf]
    %v220 = vld [vmem:[%s204 + $0x3c] sm:$0xf]
    %v221 = vld [vmem:[%s204 + $0x40] sm:$0x1]
    %v222 = vunpack.c.l.bf16 %v221
    %v223 = vpack.c.bf16 %v203, %v203
    %v224 = vlaneseq
    %v225 = vshrl.u32 %v224, 7
    %v226 = vsub.s32 0, %v225
    %v227 = vrot.slane %v222, %v226
    %v244 = vunpack.c.l.b16 %v205
    %v245 = vunpack.c.l.b16 %v206
    %v246 = vunpack.c.l.b16 %v207
    %v247 = vunpack.c.l.b16 %v208
    %v248 = vunpack.c.l.b16 %v209
    %v249 = vunpack.c.l.b16 %v210
    %v250 = vunpack.c.l.b16 %v211
    %v251 = vunpack.c.l.b16 %v212
    %v252 = vunpack.c.l.b16 %v213
    %v253 = vunpack.c.l.b16 %v214
    %v254 = vunpack.c.l.b16 %v215
    %v255 = vunpack.c.l.b16 %v216
    %v256 = vunpack.c.l.b16 %v217
    %v257 = vunpack.c.l.b16 %v218
    %v258 = vunpack.c.l.b16 %v219
    %v259 = vunpack.c.l.b16 %v220
    %v260 = vpack.c.b16 %v245, %v244
    %v261 = vpack.c.b16 %v247, %v246
    %v262 = vpack.c.b16 %v249, %v248
    %v263 = vpack.c.b16 %v251, %v250
    %v264 = vpack.c.b16 %v253, %v252
    %v265 = vpack.c.b16 %v255, %v254
    %v266 = vpack.c.b16 %v257, %v256
    %v267 = vpack.c.b16 %v259, %v258
    %276 = vmatprep.subr.bf16.mxu0 0
    %277 = vmatpush1.bf16.msra.mxu0 %v267
    %278 = vmatprep.subr.bf16.mxu0 0
    %279 = vmatpush1.bf16.msra.mxu0 %v266
    %280 = vmatprep.subr.bf16.mxu0 0
    %281 = vmatpush1.bf16.msra.mxu0 %v265
    %282 = vmatprep.subr.bf16.mxu0 0
    %283 = vmatpush1.bf16.msra.mxu0 %v264
    %284 = vmatprep.subr.bf16.mxu0 0
    %285 = vmatpush1.bf16.msra.mxu0 %v263
    %286 = vmatprep.subr.bf16.mxu0 0
    %287 = vmatpush1.bf16.msra.mxu0 %v262
    %288 = vmatprep.subr.bf16.mxu0 0
    %289 = vmatpush1.bf16.msra.mxu0 %v261
    %290 = vmatprep.subr.bf16.mxu0 0
    %291 = vmatpush1.bf16.msra.mxu0 %v260
    %292 = vmatprep.subr.bf16.mxu0 0
    %293 = vmatpush2.bf16.msra.mxu0 0
    %294 = vmatprep.subr.bf16.mxu0 0
    %295 = vmatpush2.bf16.msra.mxu0 0
    %296 = vmatprep.subr.bf16.mxu0 0
    %297 = vmatpush2.bf16.msra.mxu0 0
    %298 = vmatprep.subr.bf16.mxu0 0
    %299 = vmatpush2.bf16.msra.mxu0 0
    %300 = vmatprep.subr.bf16.mxu0 0
    %301 = vmatpush2.bf16.msra.mxu0 0
    %302 = vmatprep.subr.bf16.mxu0 0
    %303 = vmatpush2.bf16.msra.mxu0 0
    %304 = vmatprep.subr.bf16.mxu0 0
    %305 = vmatpush2.bf16.msra.mxu0 0
    %306 = vmatprep.subr.bf16.mxu0 0
    %307 = vmatpush2.bf16.msra.mxu0 0
    %308 = vmatprep.mubr.bf16.mxu0 0
    %309 = vmatmul.mubr.bf16.gmra.mxu0 %v223
    %v310 = vpop.f32.mrf.mxu0
    %v311 = vadd.f32 %v227, %v310
    %v312 = vpop.f32.mrf.mxu0
    %v313 = vpop.f32.mrf.mxu0
    %v314 = vpop.f32.mrf.mxu0
    %315 = vdwg.mxu0
    %v316 = vmax.f32 %v311, 0.0
    %s317 = scalar_lea.vmem [#allocation4], 144
    %v318 = vld [vmem:[%s317] sm:$0xf]
    %v319 = vld [vmem:[%s317 + $0x4] sm:$0xf]
    %v320 = vld [vmem:[%s317 + $0x8] sm:$0xf]
    %v321 = vld [vmem:[%s317 + $0xc] sm:$0xf]
    %v322 = vld [vmem:[%s317 + $0x10] sm:$0xf]
    %v323 = vld [vmem:[%s317 + $0x14] sm:$0xf]
    %v324 = vld [vmem:[%s317 + $0x18] sm:$0xf]
    %v325 = vld [vmem:[%s317 + $0x1c] sm:$0xf]
    %v326 = vld [vmem:[%s317 + $0x20] sm:$0xf]
    %v327 = vld [vmem:[%s317 + $0x24] sm:$0xf]
    %v328 = vld [vmem:[%s317 + $0x28] sm:$0xf]
    %v329 = vld [vmem:[%s317 + $0x2c] sm:$0xf]
    %v330 = vld [vmem:[%s317 + $0x30] sm:$0xf]
    %v331 = vld [vmem:[%s317 + $0x34] sm:$0xf]
    %v332 = vld [vmem:[%s317 + $0x38] sm:$0xf]
    %v333 = vld [vmem:[%s317 + $0x3c] sm:$0xf]
    %v334 = vld [vmem:[%s317 + $0x40] sm:$0x1]
    %v335 = vunpack.c.l.bf16 %v334
    %v336 = vpack.c.bf16 %v316, %v316
    %v337 = vlaneseq
    %v338 = vshrl.u32 %v337, 7
    %v339 = vsub.s32 0, %v338
    %v340 = vrot.slane %v335, %v339
    %v357 = vunpack.c.l.b16 %v318
    %v358 = vunpack.c.l.b16 %v319
    %v359 = vunpack.c.l.b16 %v320
    %v360 = vunpack.c.l.b16 %v321
    %v361 = vunpack.c.l.b16 %v322
    %v362 = vunpack.c.l.b16 %v323
    %v363 = vunpack.c.l.b16 %v324
    %v364 = vunpack.c.l.b16 %v325
    %v365 = vunpack.c.l.b16 %v326
    %v366 = vunpack.c.l.b16 %v327
    %v367 = vunpack.c.l.b16 %v328
    %v368 = vunpack.c.l.b16 %v329
    %v369 = vunpack.c.l.b16 %v330
    %v370 = vunpack.c.l.b16 %v331
    %v371 = vunpack.c.l.b16 %v332
    %v372 = vunpack.c.l.b16 %v333
    %v373 = vpack.c.b16 %v358, %v357
    %v374 = vpack.c.b16 %v360, %v359
    %v375 = vpack.c.b16 %v362, %v361
    %v376 = vpack.c.b16 %v364, %v363
    %v377 = vpack.c.b16 %v366, %v365
    %v378 = vpack.c.b16 %v368, %v367
    %v379 = vpack.c.b16 %v370, %v369
    %v380 = vpack.c.b16 %v372, %v371
    %389 = vmatprep.subr.bf16.mxu0 0
    %390 = vmatpush1.bf16.msra.mxu0 %v380
    %391 = vmatprep.subr.bf16.mxu0 0
    %392 = vmatpush1.bf16.msra.mxu0 %v379
    %393 = vmatprep.subr.bf16.mxu0 0
    %394 = vmatpush1.bf16.msra.mxu0 %v378
    %395 = vmatprep.subr.bf16.mxu0 0
    %396 = vmatpush1.bf16.msra.mxu0 %v377
    %397 = vmatprep.subr.bf16.mxu0 0
    %398 = vmatpush1.bf16.msra.mxu0 %v376
    %399 = vmatprep.subr.bf16.mxu0 0
    %400 = vmatpush1.bf16.msra.mxu0 %v375
    %401 = vmatprep.subr.bf16.mxu0 0
    %402 = vmatpush1.bf16.msra.mxu0 %v374
    %403 = vmatprep.subr.bf16.mxu0 0
    %404 = vmatpush1.bf16.msra.mxu0 %v373
    %405 = vmatprep.subr.bf16.mxu0 0
    %406 = vmatpush2.bf16.msra.mxu0 0
    %407 = vmatprep.subr.bf16.mxu0 0
    %408 = vmatpush2.bf16.msra.mxu0 0
    %409 = vmatprep.subr.bf16.mxu0 0
    %410 = vmatpush2.bf16.msra.mxu0 0
    %411 = vmatprep.subr.bf16.mxu0 0
    %412 = vmatpush2.bf16.msra.mxu0 0
    %413 = vmatprep.subr.bf16.mxu0 0
    %414 = vmatpush2.bf16.msra.mxu0 0
    %415 = vmatprep.subr.bf16.mxu0 0
    %416 = vmatpush2.bf16.msra.mxu0 0
    %417 = vmatprep.subr.bf16.mxu0 0
    %418 = vmatpush2.bf16.msra.mxu0 0
    %419 = vmatprep.subr.bf16.mxu0 0
    %420 = vmatpush2.bf16.msra.mxu0 0
    %421 = vmatprep.mubr.bf16.mxu0 0
    %422 = vmatmul.mubr.bf16.gmra.mxu0 %v336
    %v423 = vpop.f32.mrf.mxu0
    %v424 = vadd.f32 %v340, %v423
    %v425 = vpop.f32.mrf.mxu0
    %v426 = vpop.f32.mrf.mxu0
    %v427 = vpop.f32.mrf.mxu0
    %428 = vdwg.mxu0
    %vm429 = vcmask 64512
    %430 = vst.msk [vmem:[%s3] sm:$0xff] %vm429, %v424
    // Predicated region
    $region22: #{mlp_forward.1} parent=1 // pred_check
      _
    $region23: #{mlp_forward.1} parent=1 // pred_check_branch
      %432 = sbr.rel (0) target = $region25
    $region24: #{mlp_forward.1} parent=1 // pred_region
      _
    $region25: #{mlp_forward.1} parent=1 // pred_fallthru
      _
    // Predicated region
    $region26: #{mlp_forward.1} parent=1 // pred_check
      _
    $region27: #{mlp_forward.1} parent=1 // pred_check_branch
      %434 = sbr.rel (0) target = $region29
    $region28: #{mlp_forward.1} parent=1 // pred_region
      _
    $region29: #{mlp_forward.1} parent=1 // pred_fallthru
      _
    %435 = vsyncpa [#allocation3], 1
    %436 = vsyncpa [#allocation5], 1

</llo_original>
